<compile_context>
chip_gen: v7x
topology: tpu7x:2x2x1
jax: 0.10.0
libtpu: 0.0.40
codegen_flags: <defaults>
</compile_context>

<pallas_src>
import math
from functools import partial

import jax
import jax.numpy as jnp
from jax import lax
from jax.experimental import pallas as pl
from jax.experimental.pallas import tpu as pltpu


def _round_up(v, m):
    return ((v + m - 1) // m) * m


def noisy_linear_kernel(x_ref, wmu_ref, wsig_ref, eps_in_ref, eps_out_ref,
                        b_eff_ref, o_ref, w_eff_ref, *, mxu_bf16):
    # Grid is (N-tiles, batch-tiles); batch is the innermost ("arbitrary") axis.
    # Rebuild the effective weight once per N tile and reuse it across all
    # batch tiles (wmu/wsig blocks also stay resident across the inner loop).
    @pl.when(pl.program_id(1) == 0)
    def _():
        w_eps = eps_out_ref[...] * eps_in_ref[...]               # (tn,1)*(1,Kp) -> (tn,Kp)
        w_eff_ref[...] = wmu_ref[...] + wsig_ref[...] * w_eps    # (tn, Kp)

    lhs = x_ref[...]                                             # (tb, Kp)
    rhs = w_eff_ref[...]                                         # (tn, Kp)
    if mxu_bf16:
        lhs = lhs.astype(jnp.bfloat16)
        rhs = rhs.astype(jnp.bfloat16)

    # Contract over K of both operands (native nn.Linear (N, K) layout):
    # no in-kernel transpose, MXU matmul with f32 accumulation.
    acc = lax.dot_general(
        lhs, rhs,
        dimension_numbers=(((1,), (1,)), ((), ())),
        preferred_element_type=jnp.float32)                      # (tb, tn)

    o_ref[...] = (acc + b_eff_ref[...]).astype(o_ref.dtype)


def prepare_noisy_linear(weight_mu, weight_sigma, eps_in, eps_out,
                         bias_mu, bias_sigma, *, block_n=128):
    """One-time packing (call once per parameter update / reset_noise()).

    Pads the weight matrices to lane/tile-aligned shapes and folds the bias
    noise, so the jitted forward path never re-copies the weights.
    """
    assert block_n % 128 == 0
    N, K = weight_mu.shape
    Kp = _round_up(K, 128)
    tn = min(_round_up(N, 128), block_n)
    Np = _round_up(N, tn)                       # multiple of tn (and of 128)

    wmu_p = jnp.pad(weight_mu, ((0, Np - N), (0, Kp - K)))
    wsig_p = jnp.pad(weight_sigma, ((0, Np - N), (0, Kp - K)))
    eps_in_row = jnp.pad(eps_in, (0, Kp - K)).reshape(1, Kp)
    eps_out_col = jnp.pad(eps_out, (0, Np - N)).reshape(Np, 1)
    # bias_epsilon == eps_out, so fold b_eff = bias_mu + bias_sigma*eps_out here.
    b_eff_row = jnp.pad(bias_mu + bias_sigma * eps_out, (0, Np - N)).reshape(1, Np)
    return wmu_p, wsig_p, eps_in_row, eps_out_col, b_eff_row


# TODO(synk): for acting-time batches (B ~ 1-64) it is cheaper to fold the
# dense W_eff once per reset_noise() and reuse it across forwards than to
# stream weights through this kernel every step.
@partial(jax.jit, static_argnames=("n_out", "block_b", "block_n", "mxu_bf16"))
def noisy_linear(x, wmu_p, wsig_p, eps_in_row, eps_out_col, b_eff_row,
                 *, n_out, block_b=256, block_n=128, mxu_bf16=False):
    """NoisyLinear forward on pre-packed (prepare_noisy_linear) parameters.

    x: (B, K) float32. Returns (B, n_out).
    """
    assert block_b % 8 == 0 and block_n % 128 == 0
    B, K = x.shape
    Np, Kp = wmu_p.shape

    # Tail-safe tiling: padded extents are exact multiples of the tile sizes.
    tb = min(_round_up(B, 8), block_b)
    Bp = _round_up(B, tb)
    tn = min(Np, block_n)
    assert Np % tn == 0

    x_p = jnp.pad(x, ((0, Bp - B), (0, Kp - K)))   # no-op when already aligned

    grid = (Np // tn, Bp // tb)                    # batch tiles innermost

    out_p = pl.pallas_call(
        partial(noisy_linear_kernel, mxu_bf16=mxu_bf16),
        out_shape=jax.ShapeDtypeStruct((Bp, Np), x.dtype),
        grid=grid,
        in_specs=[
            pl.BlockSpec((tb, Kp), lambda j, i: (i, 0)),   # x (streams per batch tile)
            pl.BlockSpec((tn, Kp), lambda j, i: (j, 0)),   # weight_mu    (constant over inner axis)
            pl.BlockSpec((tn, Kp), lambda j, i: (j, 0)),   # weight_sigma (constant over inner axis)
            pl.BlockSpec((1, Kp), lambda j, i: (0, 0)),    # eps_in  (row)
            pl.BlockSpec((tn, 1), lambda j, i: (j, 0)),    # eps_out (col)
            pl.BlockSpec((1, tn), lambda j, i: (0, j)),    # b_eff = bias_mu + bias_sigma*eps_out
        ],
        out_specs=pl.BlockSpec((tb, tn), lambda j, i: (i, j)),
        scratch_shapes=[pltpu.VMEM((tn, Kp), jnp.float32)],   # cached W_eff tile
        compiler_params=pltpu.CompilerParams(
            dimension_semantics=("parallel", "arbitrary"),
            vmem_limit_bytes=48 * 1024 * 1024),
    )(x_p, wmu_p, wsig_p, eps_in_row, eps_out_col, b_eff_row)

    return out_p[:B, :n_out]


def init_noisy_linear_params(key, input_nums, output_nums, sigma):
    """Deterministic re-implementation of reset_parameters() + reset_noise().

    Returns the factored noise (eps_in, eps_out); the PyTorch module's dense
    buffers are weight_epsilon = outer(eps_out, eps_in), bias_epsilon = eps_out.
    """
    k_wmu, k_bmu, k_ein, k_eout = jax.random.split(key, 4)
    mu_range = 1.0 / math.sqrt(input_nums)

    weight_mu = jax.random.uniform(
        k_wmu, (output_nums, input_nums), jnp.float32, -mu_range, mu_range)
    weight_sigma = jnp.full((output_nums, input_nums),
                            sigma / math.sqrt(input_nums), jnp.float32)
    bias_mu = jax.random.uniform(
        k_bmu, (output_nums,), jnp.float32, -mu_range, mu_range)
    bias_sigma = jnp.full((output_nums,),
                          sigma / math.sqrt(output_nums), jnp.float32)

    def scale_noise(k, size):
        v = jax.random.normal(k, (size,), jnp.float32)
        return jnp.sign(v) * jnp.sqrt(jnp.abs(v))

    eps_in = scale_noise(k_ein, input_nums)
    eps_out = scale_noise(k_eout, output_nums)

    return weight_mu, weight_sigma, eps_in, eps_out, bias_mu, bias_sigma


def _reference(x, weight_mu, weight_sigma, eps_in, eps_out, bias_mu, bias_sigma):
    # Plain-JAX reference with the dense buffers, exactly as the PyTorch
    # module's forward computes them.
    weight_epsilon = jnp.outer(eps_out, eps_in)
    bias_epsilon = eps_out
    return x @ (weight_mu + weight_sigma * weight_epsilon).T \
        + (bias_mu + bias_sigma * bias_epsilon)


if __name__ == "__main__":
    key = jax.random.PRNGKey(0)
    k_params, k_x, k_params2, k_x2 = jax.random.split(key, 4)

    # --- Test 1: DQN-head-like small shapes, single-tile grid. ---
    batch, input_nums, output_nums, sigma = 8, 32, 64, 0.5
    params = init_noisy_linear_params(k_params, input_nums, output_nums, sigma)
    weight_mu, weight_sigma, eps_in, eps_out, bias_mu, bias_sigma = params
    x = jax.random.normal(k_x, (batch, input_nums), jnp.float32)

    prepared = prepare_noisy_linear(weight_mu, weight_sigma, eps_in, eps_out,
                                    bias_mu, bias_sigma, block_n=128)
    out = noisy_linear(x, *prepared, n_out=output_nums)
    out = jax.block_until_ready(out)

    ref = _reference(x, *params)
    assert out.shape == (batch, output_nums)
    # f32 matmuls on TPU may run as bf16 MXU passes depending on the default
    # matmul precision, so compare at a tolerance that covers that rounding.
    assert jnp.allclose(out, ref, atol=1e-2, rtol=1e-2), \
        float(jnp.max(jnp.abs(out - ref)))

    # --- Test 2: non-aligned B/K/N with a multi-tile grid (exercises the
    # tail-tile fix, the batch-innermost grid order and the W_eff caching). ---
    batch2, in2, out2 = 40, 96, 200
    params2 = init_noisy_linear_params(k_params2, in2, out2, sigma)
    x2 = jax.random.normal(k_x2, (batch2, in2), jnp.float32)
    prepared2 = prepare_noisy_linear(*params2[:4], *params2[4:], block_n=128)
    out_b = noisy_linear(x2, *prepared2, n_out=out2, block_b=16, block_n=128)
    out_b = jax.block_until_ready(out_b)
    ref2 = _reference(x2, *params2)
    assert out_b.shape == (batch2, out2)
    assert jnp.allclose(out_b, ref2, atol=1e-2, rtol=1e-2), \
        float(jnp.max(jnp.abs(out_b - ref2)))

    print("KERNEL_OK")
</pallas_src>

<mosaic_0001>
module attributes {stable_mosaic.version = 11 : i64} {
  func.func @noisy_linear_kernel(%arg0: i32, %arg1: i32, %arg2: memref<8x128xf32, #tpu.memory_space<vmem>>, %arg3: memref<128x128xf32, #tpu.memory_space<vmem>>, %arg4: memref<128x128xf32, #tpu.memory_space<vmem>>, %arg5: memref<1x128xf32, #tpu.memory_space<vmem>>, %arg6: memref<128x1xf32, #tpu.memory_space<vmem>>, %arg7: memref<1x128xf32, #tpu.memory_space<vmem>>, %arg8: memref<8x128xf32, #tpu.memory_space<vmem>>, %arg9: memref<128x128xf32, #tpu.memory_space<vmem>>) attributes {dimension_semantics = [#tpu.dimension_semantics<parallel>, #tpu.dimension_semantics<arbitrary>], iteration_bounds = array<i64: 1, 1>, scalar_prefetch = 0 : i64, scratch_operands = 1 : i64, tpu.core_type = #tpu.core_type<tc>, window_params = [{transform_indices = @transform_0, window_bounds = array<i64: 8, 128>}, {transform_indices = @transform_1, window_bounds = array<i64: 128, 128>}, {transform_indices = @transform_2, window_bounds = array<i64: 128, 128>}, {pipeline_mode = #tpu.pipeline_mode<synchronous>, transform_indices = @transform_3, window_bounds = array<i64: 1, 128>}, {transform_indices = @transform_4, window_bounds = array<i64: 128, 1>}, {transform_indices = @transform_5, window_bounds = array<i64: 1, 128>}, {transform_indices = @transform_6, window_bounds = array<i64: 8, 128>}]} {
    %c0_i32 = arith.constant 0 : i32
    %0 = arith.cmpi eq, %arg1, %c0_i32 : i32
    %1 = arith.extui %0 : i1 to i32
    %c0_i32_0 = arith.constant 0 : i32
    %2 = arith.cmpi ne, %1, %c0_i32_0 : i32
    scf.if %2 {
      %c0_8 = arith.constant 0 : index
      %c0_9 = arith.constant 0 : index
      %10 = vector.load %arg6[%c0_8, %c0_9] : memref<128x1xf32, #tpu.memory_space<vmem>>, vector<128x1xf32>
      %c0_10 = arith.constant 0 : index
      %c0_11 = arith.constant 0 : index
      %11 = vector.load %arg5[%c0_10, %c0_11] : memref<1x128xf32, #tpu.memory_space<vmem>>, vector<1x128xf32>
      %12 = vector.broadcast %10 : vector<128x1xf32> to vector<128x128xf32>
      %13 = vector.broadcast %11 : vector<1x128xf32> to vector<128x128xf32>
      %14 = arith.mulf %12, %13 : vector<128x128xf32>
      %c0_12 = arith.constant 0 : index
      %c0_13 = arith.constant 0 : index
      %15 = vector.load %arg3[%c0_12, %c0_13] : memref<128x128xf32, #tpu.memory_space<vmem>>, vector<128x128xf32>
      %c0_14 = arith.constant 0 : index
      %c0_15 = arith.constant 0 : index
      %16 = vector.load %arg4[%c0_14, %c0_15] : memref<128x128xf32, #tpu.memory_space<vmem>>, vector<128x128xf32>
      %17 = arith.mulf %16, %14 : vector<128x128xf32>
      %18 = arith.addf %15, %17 : vector<128x128xf32>
      %c0_16 = arith.constant 0 : index
      %c0_17 = arith.constant 0 : index
      %19 = vector.load %arg9[%c0_16, %c0_17] : memref<128x128xf32, #tpu.memory_space<vmem>>, vector<128x128xf32>
      tpu.vector_store %arg9[%c0_16, %c0_17], %18 {strides = array<i32>} : memref<128x128xf32, #tpu.memory_space<vmem>>, vector<128x128xf32>,
    } else {
    }
    %c0 = arith.constant 0 : index
    %c0_1 = arith.constant 0 : index
    %3 = vector.load %arg2[%c0, %c0_1] : memref<8x128xf32, #tpu.memory_space<vmem>>, vector<8x128xf32>
    %c0_2 = arith.constant 0 : index
    %c0_3 = arith.constant 0 : index
    %4 = vector.load %arg9[%c0_2, %c0_3] : memref<128x128xf32, #tpu.memory_space<vmem>>, vector<128x128xf32>
    %cst = arith.constant dense<0.000000e+00> : vector<8x128xf32>
    %5 = tpu.matmul %3, %4, %cst {dimension_numbers = #tpu.dot_dimension_numbers<[1], [1], [0], [0], [0, 0, 1, 0], [], []>} : vector<8x128xf32>, vector<128x128xf32>, vector<8x128xf32> -> vector<8x128xf32>
    %c0_4 = arith.constant 0 : index
    %c0_5 = arith.constant 0 : index
    %6 = vector.load %arg7[%c0_4, %c0_5] : memref<1x128xf32, #tpu.memory_space<vmem>>, vector<1x128xf32>
    %7 = vector.broadcast %6 : vector<1x128xf32> to vector<8x128xf32>
    %8 = arith.addf %5, %7 : vector<8x128xf32>
    %c0_6 = arith.constant 0 : index
    %c0_7 = arith.constant 0 : index
    %9 = vector.load %arg8[%c0_6, %c0_7] : memref<8x128xf32, #tpu.memory_space<vmem>>, vector<8x128xf32>
    tpu.vector_store %arg8[%c0_6, %c0_7], %8 {strides = array<i32>} : memref<8x128xf32, #tpu.memory_space<vmem>>, vector<8x128xf32>,
    return
  }
  func.func @transform_0(%arg0: i32, %arg1: i32) -> (i32, i32) {
    %c0_i32 = arith.constant 0 : i32
    %c0_i32_0 = arith.constant 0 : i32
    return %arg1, %c0_i32 : i32, i32
  }
  func.func @transform_1(%arg0: i32, %arg1: i32) -> (i32, i32) {
    %c0_i32 = arith.constant 0 : i32
    %c0_i32_0 = arith.constant 0 : i32
    return %arg0, %c0_i32 : i32, i32
  }
  func.func @transform_2(%arg0: i32, %arg1: i32) -> (i32, i32) {
    %c0_i32 = arith.constant 0 : i32
    %c0_i32_0 = arith.constant 0 : i32
    return %arg0, %c0_i32 : i32, i32
  }
  func.func @transform_3(%arg0: i32, %arg1: i32) -> (i32, i32) {
    %c0_i32 = arith.constant 0 : i32
    %c0_i32_0 = arith.constant 0 : i32
    %c0_i32_1 = arith.constant 0 : i32
    return %c0_i32, %c0_i32_0 : i32, i32
  }
  func.func @transform_4(%arg0: i32, %arg1: i32) -> (i32, i32) {
    %c0_i32 = arith.constant 0 : i32
    %c0_i32_0 = arith.constant 0 : i32
    return %arg0, %c0_i32 : i32, i32
  }
  func.func @transform_5(%arg0: i32, %arg1: i32) -> (i32, i32) {
    %c0_i32 = arith.constant 0 : i32
    %c0_i32_0 = arith.constant 0 : i32
    return %c0_i32, %arg0 : i32, i32
  }
  func.func @transform_6(%arg0: i32, %arg1: i32) -> (i32, i32) {
    %c0_i32 = arith.constant 0 : i32
    return %arg1, %arg0 : i32, i32
  }
}

</mosaic_0001>

<llo_original>
// kernel: noisy_linear.1
$region0: #{noisy_linear.1}
  #allocation0 [shape = 'u32[]', space=smem, size = 0x4, offset = 0x4, fixed_abs, tag = 'smem constant byte address 0x4 - core index']
  #allocation1 [shape = 'u32[144,128]{1,0:T(1,128)}', space=vmem, size = 0x12000, scoped, tag = 'internal scratch']
  #allocation2 [shape = 'f32[128,128]{1,0:T(8,128)}', space=vmem, size = 0x10000, scoped, tag = 'scratch operand']
  %s0 = inlined_call_operand.vmem [shape: f32[8,128], index: 0, kind: input, shape index: {}]
  %s1 = inlined_call_operand.vmem [shape: f32[128,128], index: 1, kind: input, shape index: {}]
  %s2 = inlined_call_operand.hbm [shape: f32[128,128], index: 2, kind: input, shape index: {}]
  %s3 = inlined_call_operand.vmem [shape: f32[1,128], index: 3, kind: input, shape index: {}]
  %s4 = inlined_call_operand.vmem [shape: f32[128,1], index: 4, kind: input, shape index: {}]
  %s5 = inlined_call_operand.vmem [shape: f32[1,128], index: 5, kind: input, shape index: {}]
  %s6 = inlined_call_operand.hbm [shape: f32[8,128], index: 6, kind: output, shape index: {}]
  %s7 = sld [smem:[#allocation0]]
  $region42: #{noisy_linear.1} parent=0
    _
  %s9 = ssub.s32 1, %s7
  %s10 = scalar_select 0, %s9, %s7
  $region1: #{noisy_linear.1} parent=0
    #allocation3 [shape = 'u8[65536]{0}', space=vmem, size = 0x10000, scoped, tag = 'input window, operand 2, single buffered']
    #allocation4 [shape = 's32[1]{0}', space=sflag, size = 0x4, scoped, tag = 'scoped memory for noisy_linear.1']
    #allocation5 [shape = 's32[1]{0}', space=sflag, size = 0x4, scoped, tag = 'scoped memory for noisy_linear.1']
    #allocation6 [shape = 'u8[4096]{0}', space=vmem, size = 0x1000, scoped, tag = 'output window, operand 0, single buffered']
    %11 = vsyncpa [#allocation4], 0
    %12 = vsyncpa [#allocation5], 0
    // Predicated region
    $region2: #{noisy_linear.1} parent=1 // pred_check
      _
    $region3: #{noisy_linear.1} parent=1 // pred_check_branch
      %14 = sbr.rel (0) target = $region5
    $region4: #{noisy_linear.1} parent=1 // pred_region
      _
    $region5: #{noisy_linear.1} parent=1 // pred_fallthru
      _
    // Predicated region
    $region6: #{noisy_linear.1} parent=1 // pred_check
      _
    $region7: #{noisy_linear.1} parent=1 // pred_check_branch
      %16 = sbr.rel (0) target = $region9
    $region8: #{noisy_linear.1} parent=1 // pred_region
      _
    $region9: #{noisy_linear.1} parent=1 // pred_fallthru
      _
    // Predicated region
    $region10: #{noisy_linear.1} parent=1 // pred_check
      _
    $region11: #{noisy_linear.1} parent=1 // pred_check_branch
      %18 = sbr.rel (0) target = $region13
    $region12: #{noisy_linear.1} parent=1 // pred_region
      %s20 = ssub.s32 2048, 2048
      %21 = vsyncadd [#allocation4], %s20
      %s22 = sshll.u32 [#allocation3], 4
      %s23 = int_to_ptr.vmem [resolvable:$true] %s22
      %28 = dma.hbm_to_vmem [thread:$0]  %s2, 2048, %s23, [#allocation4], 128, 128, 8
    $region13: #{noisy_linear.1} parent=1 // pred_fallthru
      _
    // Predicated region
    $region14: #{noisy_linear.1} parent=1 // pred_check
      _
    $region15: #{noisy_linear.1} parent=1 // pred_check_branch
      %30 = sbr.rel (0) target = $region17
    $region16: #{noisy_linear.1} parent=1 // pred_region
      _
    $region17: #{noisy_linear.1} parent=1 // pred_fallthru
      _
    // Predicated region
    $region18: #{noisy_linear.1} parent=1 // pred_check
      _
    $region19: #{noisy_linear.1} parent=1 // pred_check_branch
      %32 = sbr.rel (0) target = $region21
    $region20: #{noisy_linear.1} parent=1 // pred_region
      _
    $region21: #{noisy_linear.1} parent=1 // pred_fallthru
      _
    // Predicated region
    $region22: #{noisy_linear.1} parent=1 // pred_check
      _
    $region23: #{noisy_linear.1} parent=1 // pred_check_branch
      %34 = sbr.rel (0) target = $region25
    $region24: #{noisy_linear.1} parent=1 // pred_region
      _
    $region25: #{noisy_linear.1} parent=1 // pred_fallthru
      _
    // Predicated region
    $region26: #{noisy_linear.1} parent=1 // pred_check
      _
    $region27: #{noisy_linear.1} parent=1 // pred_check_branch
      %36 = sbr.rel (0) target = $region29
    $region28: #{noisy_linear.1} parent=1 // pred_region
      %37 = dma.done [#allocation4], 2048
    $region29: #{noisy_linear.1} parent=1 // pred_fallthru
      _
    %p38 = scmp.eq.s32.totalorder 0, 0
    // Predicated region
    $region30: #{noisy_linear.1} parent=1 // pred_check
      %p39 = pneg %p38
    $region31: #{noisy_linear.1} parent=1 // pred_check_branch
      %41 = sbr.rel (%p39) target = $region33
    $region32: #{noisy_linear.1} parent=1 // pred_region
      %v42 = vld [vmem:[%s4] sm:$0xff]
      %v43 = vld [vmem:[%s4 + $0x8] sm:$0xff]
      %v44 = vld [vmem:[%s4 + $0x10] sm:$0xff]
      %v45 = vld [vmem:[%s4 + $0x18] sm:$0xff]
      %v46 = vld [vmem:[%s4 + $0x20] sm:$0xff]
      %v47 = vld [vmem:[%s4 + $0x28] sm:$0xff]
      %v48 = vld [vmem:[%s4 + $0x30] sm:$0xff]
      %v49 = vld [vmem:[%s4 + $0x38] sm:$0xff]
      %v50 = vld [vmem:[%s4 + $0x40] sm:$0xff]
      %v51 = vld [vmem:[%s4 + $0x48] sm:$0xff]
      %v52 = vld [vmem:[%s4 + $0x50] sm:$0xff]
      %v53 = vld [vmem:[%s4 + $0x58] sm:$0xff]
      %v54 = vld [vmem:[%s4 + $0x60] sm:$0xff]
      %v55 = vld [vmem:[%s4 + $0x68] sm:$0xff]
      %v56 = vld [vmem:[%s4 + $0x70] sm:$0xff]
      %v57 = vld [vmem:[%s4 + $0x78] sm:$0xff]
      %v58 = vld [vmem:[%s3] sm:$0x1]
      %60 = vset.pattern.permute.xlu0 0
      %61 = vperm.xlu0 %60, %v42
      %v62 = vpop.permute.xlu0 %61
      %65 = vset.pattern.permute.xlu0 0
      %66 = vperm.xlu0 %65, %v43
      %v67 = vpop.permute.xlu0 %66
      %70 = vset.pattern.permute.xlu0 0
      %71 = vperm.xlu0 %70, %v44
      %v72 = vpop.permute.xlu0 %71
      %75 = vset.pattern.permute.xlu0 0
      %76 = vperm.xlu0 %75, %v45
      %v77 = vpop.permute.xlu0 %76
      %80 = vset.pattern.permute.xlu0 0
      %81 = vperm.xlu0 %80, %v46
      %v82 = vpop.permute.xlu0 %81
      %85 = vset.pattern.permute.xlu0 0
      %86 = vperm.xlu0 %85, %v47
      %v87 = vpop.permute.xlu0 %86
      %90 = vset.pattern.permute.xlu0 0
      %91 = vperm.xlu0 %90, %v48
      %v92 = vpop.permute.xlu0 %91
      %95 = vset.pattern.permute.xlu0 0
      %96 = vperm.xlu0 %95, %v49
      %v97 = vpop.permute.xlu0 %96
      %100 = vset.pattern.permute.xlu0 0
      %101 = vperm.xlu0 %100, %v50
      %v102 = vpop.permute.xlu0 %101
      %105 = vset.pattern.permute.xlu0 0
      %106 = vperm.xlu0 %105, %v51
      %v107 = vpop.permute.xlu0 %106
      %110 = vset.pattern.permute.xlu0 0
      %111 = vperm.xlu0 %110, %v52
      %v112 = vpop.permute.xlu0 %111
      %115 = vset.pattern.permute.xlu0 0
      %116 = vperm.xlu0 %115, %v53
      %v117 = vpop.permute.xlu0 %116
      %120 = vset.pattern.permute.xlu0 0
      %121 = vperm.xlu0 %120, %v54
      %v122 = vpop.permute.xlu0 %121
      %125 = vset.pattern.permute.xlu0 0
      %126 = vperm.xlu0 %125, %v55
      %v127 = vpop.permute.xlu0 %126
      %130 = vset.pattern.permute.xlu0 0
      %131 = vperm.xlu0 %130, %v56
      %v132 = vpop.permute.xlu0 %131
      %135 = vset.pattern.permute.xlu0 0
      %136 = vperm.xlu0 %135, %v57
      %v137 = vpop.permute.xlu0 %136
      %v140 = vlaneseq
      %v141 = vshrl.u32 %v140, 7
      %v142 = vsub.s32 0, %v141
      %v143 = vrot.slane %v58, %v142
      %v145 = vmul.f32 %v62, %v143
      %v146 = vmul.f32 %v67, %v143
      %v147 = vmul.f32 %v72, %v143
      %v148 = vmul.f32 %v77, %v143
      %v149 = vmul.f32 %v82, %v143
      %v150 = vmul.f32 %v87, %v143
      %v151 = vmul.f32 %v92, %v143
      %v152 = vmul.f32 %v97, %v143
      %v153 = vmul.f32 %v102, %v143
      %v154 = vmul.f32 %v107, %v143
      %v155 = vmul.f32 %v112, %v143
      %v156 = vmul.f32 %v117, %v143
      %v157 = vmul.f32 %v122, %v143
      %v158 = vmul.f32 %v127, %v143
      %v159 = vmul.f32 %v132, %v143
      %v160 = vmul.f32 %v137, %v143
      %v161 = vld [vmem:[%s1] sm:$0xff]
      %v162 = vld [vmem:[%s1 + $0x8] sm:$0xff]
      %v163 = vld [vmem:[%s1 + $0x10] sm:$0xff]
      %v164 = vld [vmem:[%s1 + $0x18] sm:$0xff]
      %v165 = vld [vmem:[%s1 + $0x20] sm:$0xff]
      %v166 = vld [vmem:[%s1 + $0x28] sm:$0xff]
      %v167 = vld [vmem:[%s1 + $0x30] sm:$0xff]
      %v168 = vld [vmem:[%s1 + $0x38] sm:$0xff]
      %v169 = vld [vmem:[%s1 + $0x40] sm:$0xff]
      %v170 = vld [vmem:[%s1 + $0x48] sm:$0xff]
      %v171 = vld [vmem:[%s1 + $0x50] sm:$0xff]
      %v172 = vld [vmem:[%s1 + $0x58] sm:$0xff]
      %v173 = vld [vmem:[%s1 + $0x60] sm:$0xff]
      %v174 = vld [vmem:[%s1 + $0x68] sm:$0xff]
      %v175 = vld [vmem:[%s1 + $0x70] sm:$0xff]
      %v176 = vld [vmem:[%s1 + $0x78] sm:$0xff]
      %v177 = vld [vmem:[#allocation3] sm:$0xff]
      %v178 = vld [vmem:[#allocation3 + $0x8] sm:$0xff]
      %v179 = vld [vmem:[#allocation3 + $0x10] sm:$0xff]
      %v180 = vld [vmem:[#allocation3 + $0x18] sm:$0xff]
      %v181 = vld [vmem:[#allocation3 + $0x20] sm:$0xff]
      %v182 = vld [vmem:[#allocation3 + $0x28] sm:$0xff]
      %v183 = vld [vmem:[#allocation3 + $0x30] sm:$0xff]
      %v184 = vld [vmem:[#allocation3 + $0x38] sm:$0xff]
      %v185 = vld [vmem:[#allocation3 + $0x40] sm:$0xff]
      %v186 = vld [vmem:[#allocation3 + $0x48] sm:$0xff]
      %v187 = vld [vmem:[#allocation3 + $0x50] sm:$0xff]
      %v188 = vld [vmem:[#allocation3 + $0x58] sm:$0xff]
      %v189 = vld [vmem:[#allocation3 + $0x60] sm:$0xff]
      %v190 = vld [vmem:[#allocation3 + $0x68] sm:$0xff]
      %v191 = vld [vmem:[#allocation3 + $0x70] sm:$0xff]
      %v192 = vld [vmem:[#allocation3 + $0x78] sm:$0xff]
      %v193 = vmul.f32 %v177, %v145
      %v194 = vmul.f32 %v178, %v146
      %v195 = vmul.f32 %v179, %v147
      %v196 = vmul.f32 %v180, %v148
      %v197 = vmul.f32 %v181, %v149
      %v198 = vmul.f32 %v182, %v150
      %v199 = vmul.f32 %v183, %v151
      %v200 = vmul.f32 %v184, %v152
      %v201 = vmul.f32 %v185, %v153
      %v202 = vmul.f32 %v186, %v154
      %v203 = vmul.f32 %v187, %v155
      %v204 = vmul.f32 %v188, %v156
      %v205 = vmul.f32 %v189, %v157
      %v206 = vmul.f32 %v190, %v158
      %v207 = vmul.f32 %v191, %v159
      %v208 = vmul.f32 %v192, %v160
      %v209 = vadd.f32 %v161, %v193
      %v210 = vadd.f32 %v162, %v194
      %v211 = vadd.f32 %v163, %v195
      %v212 = vadd.f32 %v164, %v196
      %v213 = vadd.f32 %v165, %v197
      %v214 = vadd.f32 %v166, %v198
      %v215 = vadd.f32 %v167, %v199
      %v216 = vadd.f32 %v168, %v200
      %v217 = vadd.f32 %v169, %v201
      %v218 = vadd.f32 %v170, %v202
      %v219 = vadd.f32 %v171, %v203
      %v220 = vadd.f32 %v172, %v204
      %v221 = vadd.f32 %v173, %v205
      %v222 = vadd.f32 %v174, %v206
      %v223 = vadd.f32 %v175, %v207
      %v224 = vadd.f32 %v176, %v208
      %225 = vst [vmem:[#allocation2] sm:$0xff] %v209
      %226 = vst [vmem:[#allocation2 + $0x8] sm:$0xff] %v210
      %227 = vst [vmem:[#allocation2 + $0x10] sm:$0xff] %v211
      %228 = vst [vmem:[#allocation2 + $0x18] sm:$0xff] %v212
      %229 = vst [vmem:[#allocation2 + $0x20] sm:$0xff] %v213
      %230 = vst [vmem:[#allocation2 + $0x28] sm:$0xff] %v214
      %231 = vst [vmem:[#allocation2 + $0x30] sm:$0xff] %v215
      %232 = vst [vmem:[#allocation2 + $0x38] sm:$0xff] %v216
      %233 = vst [vmem:[#allocation2 + $0x40] sm:$0xff] %v217
      %234 = vst [vmem:[#allocation2 + $0x48] sm:$0xff] %v218
      %235 = vst [vmem:[#allocation2 + $0x50] sm:$0xff] %v219
      %236 = vst [vmem:[#allocation2 + $0x58] sm:$0xff] %v220
      %237 = vst [vmem:[#allocation2 + $0x60] sm:$0xff] %v221
      %238 = vst [vmem:[#allocation2 + $0x68] sm:$0xff] %v222
      %239 = vst [vmem:[#allocation2 + $0x70] sm:$0xff] %v223
      %240 = vst [vmem:[#allocation2 + $0x78] sm:$0xff] %v224
    $region33: #{noisy_linear.1} parent=1 // pred_fallthru
      _
    %v241 = vld [vmem:[%s0] sm:$0xff]
    %v242 = vld [vmem:[#allocation2] sm:$0xff]
    %v243 = vld [vmem:[#allocation2 + $0x8] sm:$0xff]
    %v244 = vld [vmem:[#allocation2 + $0x10] sm:$0xff]
    %v245 = vld [vmem:[#allocation2 + $0x18] sm:$0xff]
    %v246 = vld [vmem:[#allocation2 + $0x20] sm:$0xff]
    %v247 = vld [vmem:[#allocation2 + $0x28] sm:$0xff]
    %v248 = vld [vmem:[#allocation2 + $0x30] sm:$0xff]
    %v249 = vld [vmem:[#allocation2 + $0x38] sm:$0xff]
    %v250 = vld [vmem:[#allocation2 + $0x40] sm:$0xff]
    %v251 = vld [vmem:[#allocation2 + $0x48] sm:$0xff]
    %v252 = vld [vmem:[#allocation2 + $0x50] sm:$0xff]
    %v253 = vld [vmem:[#allocation2 + $0x58] sm:$0xff]
    %v254 = vld [vmem:[#allocation2 + $0x60] sm:$0xff]
    %v255 = vld [vmem:[#allocation2 + $0x68] sm:$0xff]
    %v256 = vld [vmem:[#allocation2 + $0x70] sm:$0xff]
    %v257 = vld [vmem:[#allocation2 + $0x78] sm:$0xff]
    %v258 = vld [vmem:[%s5] sm:$0x1]
    %v260 = vlaneseq
    %v261 = vshrl.u32 %v260, 7
    %v262 = vsub.s32 0, %v261
    %v263 = vrot.slane %v258, %v262
    %265 = vmatprep.subr.mxu0 0.0
    %266 = vmatpush1.xpose.msra.mxu0 %v242
    %267 = vmatprep.subr.mxu0 0.0
    %268 = vmatpush1.xpose.msra.mxu0 %v243
    %269 = vmatprep.subr.mxu0 0.0
    %270 = vmatpush1.xpose.msra.mxu0 %v244
    %271 = vmatprep.subr.mxu0 0.0
    %272 = vmatpush1.xpose.msra.mxu0 %v245
    %273 = vmatprep.subr.mxu0 0.0
    %274 = vmatpush1.xpose.msra.mxu0 %v246
    %275 = vmatprep.subr.mxu0 0.0
    %276 = vmatpush1.xpose.msra.mxu0 %v247
    %277 = vmatprep.subr.mxu0 0.0
    %278 = vmatpush1.xpose.msra.mxu0 %v248
    %279 = vmatprep.subr.mxu0 0.0
    %280 = vmatpush1.xpose.msra.mxu0 %v249
    %281 = vmatprep.subr.mxu0 0.0
    %282 = vmatpush1.xpose.msra.mxu0 %v250
    %283 = vmatprep.subr.mxu0 0.0
    %284 = vmatpush1.xpose.msra.mxu0 %v251
    %285 = vmatprep.subr.mxu0 0.0
    %286 = vmatpush1.xpose.msra.mxu0 %v252
    %287 = vmatprep.subr.mxu0 0.0
    %288 = vmatpush1.xpose.msra.mxu0 %v253
    %289 = vmatprep.subr.mxu0 0.0
    %290 = vmatpush1.xpose.msra.mxu0 %v254
    %291 = vmatprep.subr.mxu0 0.0
    %292 = vmatpush1.xpose.msra.mxu0 %v255
    %293 = vmatprep.subr.mxu0 0.0
    %294 = vmatpush1.xpose.msra.mxu0 %v256
    %295 = vmatprep.subr.mxu0 0.0
    %296 = vmatpush1.xpose.msra.mxu0 %v257
    %297 = vmatprep.subr.mxu0 0.0
    %298 = vmatpush1.xpose.msra.mxu0 0.0
    %299 = vmatprep.subr.mxu0 0.0
    %300 = vmatpush1.xpose.msra.mxu0 0.0
    %301 = vmatprep.subr.mxu0 0.0
    %302 = vmatpush1.xpose.msra.mxu0 0.0
    %303 = vmatprep.subr.mxu0 0.0
    %304 = vmatpush1.xpose.msra.mxu0 0.0
    %305 = vmatprep.subr.mxu0 0.0
    %306 = vmatpush1.xpose.msra.mxu0 0.0
    %307 = vmatprep.subr.mxu0 0.0
    %308 = vmatpush1.xpose.msra.mxu0 0.0
    %309 = vmatprep.subr.mxu0 0.0
    %310 = vmatpush1.xpose.msra.mxu0 0.0
    %311 = vmatprep.subr.mxu0 0.0
    %312 = vmatpush1.xpose.msra.mxu0 0.0
    %313 = vmatprep.subr.mxu0 0.0
    %314 = vmatpush1.xpose.msra.mxu0 0.0
    %315 = vmatprep.subr.mxu0 0.0
    %316 = vmatpush1.xpose.msra.mxu0 0.0
    %317 = vmatprep.subr.mxu0 0.0
    %318 = vmatpush1.xpose.msra.mxu0 0.0
    %319 = vmatprep.subr.mxu0 0.0
    %320 = vmatpush1.xpose.msra.mxu0 0.0
    %321 = vmatprep.subr.mxu0 0.0
    %322 = vmatpush1.xpose.msra.mxu0 0.0
    %323 = vmatprep.subr.mxu0 0.0
    %324 = vmatpush1.xpose.msra.mxu0 0.0
    %325 = vmatprep.subr.mxu0 0.0
    %326 = vmatpush1.xpose.msra.mxu0 0.0
    %327 = vmatprep.subr.mxu0 0.0
    %328 = vmatpush1.xpose.msra.mxu0 0.0
    %329 = vmatprep.mubr.f32.mxu0 0.0
    %330 = vmatmul.mubr.f32.gmra.mrb[0].mxu0 %v241
    %v331 = vpop.f32.mrb[0].mxu0
    %v332 = vadd.f32 %v263, %v331
    %v333 = vpop.f32.mrb[0].mxu0
    %334 = vdwg.mxu0
    %335 = vst [vmem:[#allocation6] sm:$0xff] %v332
    // Predicated region
    $region34: #{noisy_linear.1} parent=1 // pred_check
      _
    $region35: #{noisy_linear.1} parent=1 // pred_check_branch
      %337 = sbr.rel (0) target = $region37
    $region36: #{noisy_linear.1} parent=1 // pred_region
      %s339 = ssub.s32 128, 128
      %340 = vsyncadd [#allocation5], %s339
      %s342 = sshll.u32 [#allocation6], 4
      %s343 = int_to_ptr.vmem [resolvable:$true] %s342
      %345 = dma.vmem_to_hbm [thread:$0]  %s343, 128, %s6, [#allocation5]
    $region37: #{noisy_linear.1} parent=1 // pred_fallthru
      _
    // Predicated region
    $region38: #{noisy_linear.1} parent=1 // pred_check
      _
    $region39: #{noisy_linear.1} parent=1 // pred_check_branch
      %347 = sbr.rel (0) target = $region41
    $region40: #{noisy_linear.1} parent=1 // pred_region
      %348 = dma.done [#allocation5], 128
    $region41: #{noisy_linear.1} parent=1 // pred_fallthru
      _
    %349 = vsyncpa [#allocation4], 1
    %350 = vsyncpa [#allocation5], 1

</llo_original>
